<compile_context>
chip_gen: v7x
topology: tpu7x:2x2x1
jax: 0.10.0
libtpu: 0.0.40
codegen_flags: <defaults>
</compile_context>

<pallas_src>
import functools

import jax
import jax.numpy as jnp
from jax import lax
from jax.experimental import pallas as pl
from jax.experimental.pallas import tpu as pltpu

N_OUT = 10  # logical output width of nn.Linear(D, 10)


def _round_up(x, m):
    return (x + m - 1) // m * m


def _cdiv(a, b):
    return (a + b - 1) // b


def _linear_kernel(x_ref, w_ref, b_ref, o_ref, acc_ref, *, d, tk):
    """MAC one (TB, TK) x-tile with a (TK, 10) w-tile into a resident f32 acc."""
    k = pl.program_id(1)

    @pl.when(k == 0)
    def _():
        acc_ref[...] = jnp.zeros_like(acc_ref)

    x_blk = x_ref[...]
    w_blk = w_ref[...]
    if d % tk != 0:
        # Ragged last K tile: zero the out-of-range columns/rows so garbage in
        # the OOB window cannot poison the accumulator (cheap VPU work, hidden
        # under the DMA on this mem-bound kernel).
        valid = d - k * tk
        col = lax.broadcasted_iota(jnp.int32, x_blk.shape, 1)
        x_blk = jnp.where(col < valid, x_blk, 0)
        row = lax.broadcasted_iota(jnp.int32, w_blk.shape, 0)
        w_blk = jnp.where(row < valid, w_blk, 0)

    acc_ref[...] += jnp.dot(x_blk, w_blk, preferred_element_type=jnp.float32)

    @pl.when(k == pl.num_programs(1) - 1)
    def _():
        o_ref[...] = (acc_ref[...] + b_ref[...]).astype(o_ref.dtype)


def prepare_params(weight, bias):
    """One-time parameter prep (do NOT call per forward pass).

    weight : (10, D)  PyTorch nn.Linear layout
    bias   : (10,)
    returns: w_t (D, 10) in the weight dtype, b (1, 10) f32
    """
    w_t = jnp.asarray(weight).T                       # (D, 10)
    b = jnp.asarray(bias, dtype=jnp.float32).reshape(1, N_OUT)
    return w_t, b


def qua_forward(x, w_t, b, *, _force_tk=None):
    """Pallas implementation of Qua.forward.

    x      : any shape with leading batch dim; flattened to (B, D)
    w_t    : (D, 10) from prepare_params
    b      : (1, 10) from prepare_params
    returns: (B, 10) in x.dtype
    """
    B = x.shape[0]
    x2 = x.reshape(B, -1)                 # keep input dtype (no up-cast)
    D = x2.shape[1]
    assert w_t.shape == (D, N_OUT)

    out_dtype = x2.dtype                  # NOTE: output follows input dtype
    x_item = x2.dtype.itemsize
    w_item = w_t.dtype.itemsize
    o_item = jnp.dtype(out_dtype).itemsize

    # Sublane packing: 8 rows for 32-bit, 16 for 16-bit, 32 for 8-bit inputs.
    sub = max(8, 32 // x_item)

    # Generation-aware VMEM budget (v5e/v6e: 128 MiB, v7x: 64 MiB).
    try:
        vmem_cap = int(pltpu.get_tpu_info().vmem_capacity_bytes)
    except Exception:  # pragma: no cover - conservative fallback
        vmem_cap = 64 << 20
    cap = (24 << 20) if vmem_cap <= (64 << 20) else (56 << 20)

    def footprint(tb, tk, n_k, x_bufs=2):
        return (x_bufs * tb * tk * x_item                       # streamed x
                + (1 if n_k == 1 else 2) * tk * N_OUT * w_item  # weight tiles
                + 2 * tb * N_OUT * o_item                       # output tiles
                + tb * N_OUT * 4                                # f32 accum
                + N_OUT * 4)                                    # bias

    # ---- tile selection --------------------------------------------------
    TB = min(1024, _round_up(B, sub))
    TK = D
    # Shrink TB first, but not below 512 rows (per-step overhead / DMA eff.).
    while footprint(TB, TK, 1) > cap and TB > max(512, sub):
        TB = max(_round_up(TB // 2, sub), sub)
    if footprint(TB, TK, 1) > cap:
        # K-tile instead of collapsing TB further (v7x large-D case).
        TK = 128
        while 2 * TK < _round_up(D, 128) and footprint(TB, 2 * TK, 2) <= cap:
            TK *= 2
        while footprint(TB, TK, 2) > cap and TB > sub:
            TB = max(_round_up(TB // 2, sub), sub)
    if _force_tk is not None:             # test hook (128-aligned or == D)
        TK = _force_tk
    nk = _cdiv(D, TK)

    # Ensure >=2 batch tiles when B is large enough so the "parallel" axis
    # actually shards across both v7x TensorCores (harmless elsewhere).
    if _cdiv(B, TB) < 2 and TB >= 512:
        TB = _round_up(TB // 2, sub)
    nb = _cdiv(B, TB)

    # Deepen x prefetch when the budget allows and the grid is long enough.
    x_pipeline = None
    if nb * nk >= 3 and footprint(TB, TK, nk, x_bufs=3) <= cap:
        x_pipeline = pl.Buffered(3)

    vmem_bytes = int(min(vmem_cap * 4 // 5,
                         max(2 * footprint(TB, TK, nk, 3), 32 << 20)))

    if x_pipeline is not None:
        x_spec = pl.BlockSpec((TB, TK), lambda i, k: (i, k),
                              pipeline_mode=x_pipeline)
    else:
        x_spec = pl.BlockSpec((TB, TK), lambda i, k: (i, k))

    cost = pl.CostEstimate(
        flops=2 * B * D * N_OUT,
        transcendentals=0,
        bytes_accessed=(B * D * x_item + nb * D * N_OUT * w_item
                        + B * N_OUT * o_item + N_OUT * 4),
    )

    kernel = functools.partial(_linear_kernel, d=D, tk=TK)

    out = pl.pallas_call(
        kernel,
        out_shape=jax.ShapeDtypeStruct((B, N_OUT), out_dtype),
        grid=(nb, nk),
        in_specs=[
            x_spec,                                            # streamed x
            pl.BlockSpec((TK, N_OUT), lambda i, k: (k, 0)),    # weight tiles
            pl.BlockSpec((1, N_OUT), lambda i, k: (0, 0)),     # resident bias
        ],
        out_specs=pl.BlockSpec((TB, N_OUT), lambda i, k: (i, 0)),
        scratch_shapes=[pltpu.VMEM((TB, N_OUT), jnp.float32)],
        compiler_params=pltpu.CompilerParams(
            dimension_semantics=("parallel", "arbitrary"),
            vmem_limit_bytes=vmem_bytes,
        ),
        cost_estimate=cost,
    )(x2, w_t, b)

    return out


if __name__ == "__main__":
    key = jax.random.PRNGKey(0)
    k_x, k_w, k_b, k_x2, k_w2, k_b2 = jax.random.split(key, 6)

    # ---- Test 1: small shapes consistent with the module (input_units=32) --
    B, C, H, W = 2, 2, 4, 4
    D = C * H * W
    x = jax.random.normal(k_x, (B, C, H, W), dtype=jnp.float32)
    bound = 1.0 / jnp.sqrt(jnp.float32(D))
    weight = jax.random.uniform(k_w, (10, D), minval=-bound, maxval=bound,
                                dtype=jnp.float32)
    bias = jax.random.uniform(k_b, (10,), minval=-bound, maxval=bound,
                              dtype=jnp.float32)

    w_t, b = prepare_params(weight, bias)     # one-time prep
    out = qua_forward(x, w_t, b)
    jax.block_until_ready(out)

    ref = x.reshape(B, -1) @ weight.T + bias
    assert out.shape == (B, 10)
    assert jnp.allclose(out, ref, atol=1e-5, rtol=1e-5)

    # ---- Test 2: exercise ragged batch + K-tiling (accumulator) path -------
    B2, D2 = 10, 300
    x2 = jax.random.normal(k_x2, (B2, 3, 10, 10), dtype=jnp.float32)
    bound2 = 1.0 / jnp.sqrt(jnp.float32(D2))
    weight2 = jax.random.uniform(k_w2, (10, D2), minval=-bound2, maxval=bound2,
                                 dtype=jnp.float32)
    bias2 = jax.random.uniform(k_b2, (10,), minval=-bound2, maxval=bound2,
                               dtype=jnp.float32)
    w_t2, b2 = prepare_params(weight2, bias2)
    out2 = qua_forward(x2, w_t2, b2, _force_tk=128)   # nk=3, ragged last tile
    jax.block_until_ready(out2)

    ref2 = x2.reshape(B2, -1) @ weight2.T + bias2
    assert out2.shape == (B2, 10)
    assert jnp.allclose(out2, ref2, atol=1e-4, rtol=1e-4)

    print("KERNEL_OK")
</pallas_src>

<mosaic_0001>
module attributes {stable_mosaic.version = 11 : i64} {
  func.func @_linear_kernel(%arg0: i32, %arg1: i32, %arg2: memref<8x32xf32, #tpu.memory_space<vmem>>, %arg3: memref<32x10xf32, #tpu.memory_space<vmem>>, %arg4: memref<1x10xf32, #tpu.memory_space<vmem>>, %arg5: memref<8x10xf32, #tpu.memory_space<vmem>>, %arg6: memref<8x10xf32, #tpu.memory_space<vmem>>) attributes {dimension_semantics = [#tpu.dimension_semantics<parallel>, #tpu.dimension_semantics<arbitrary>], iteration_bounds = array<i64: 1, 1>, scalar_prefetch = 0 : i64, scratch_operands = 1 : i64, tpu.core_type = #tpu.core_type<tc>, window_params = [{transform_indices = @transform_0, window_bounds = array<i64: 8, 32>}, {transform_indices = @transform_1, window_bounds = array<i64: 32, 10>}, {pipeline_mode = #tpu.pipeline_mode<synchronous>, transform_indices = @transform_2, window_bounds = array<i64: 1, 10>}, {transform_indices = @transform_3, window_bounds = array<i64: 8, 10>}]} {
    %c0_i32 = arith.constant 0 : i32
    %0 = arith.cmpi eq, %arg1, %c0_i32 : i32
    %1 = arith.extui %0 : i1 to i32
    %c0_i32_0 = arith.constant 0 : i32
    %2 = arith.cmpi ne, %1, %c0_i32_0 : i32
    scf.if %2 {
      %cst_10 = arith.constant 0.000000e+00 : f32
      %12 = vector.broadcast %cst_10 : f32 to vector<8x10xf32>
      %c0_11 = arith.constant 0 : index
      %c0_12 = arith.constant 0 : index
      %13 = vector.load %arg6[%c0_11, %c0_12] : memref<8x10xf32, #tpu.memory_space<vmem>>, vector<8x10xf32>
      tpu.vector_store %arg6[%c0_11, %c0_12], %12 {strides = array<i32>} : memref<8x10xf32, #tpu.memory_space<vmem>>, vector<8x10xf32>,
    } else {
    }
    %c0 = arith.constant 0 : index
    %c0_1 = arith.constant 0 : index
    %3 = vector.load %arg2[%c0, %c0_1] : memref<8x32xf32, #tpu.memory_space<vmem>>, vector<8x32xf32>
    %c0_2 = arith.constant 0 : index
    %c0_3 = arith.constant 0 : index
    %4 = vector.load %arg3[%c0_2, %c0_3] : memref<32x10xf32, #tpu.memory_space<vmem>>, vector<32x10xf32>
    %c0_4 = arith.constant 0 : index
    %c0_5 = arith.constant 0 : index
    %5 = vector.load %arg6[%c0_4, %c0_5] : memref<8x10xf32, #tpu.memory_space<vmem>>, vector<8x10xf32>
    %cst = arith.constant dense<0.000000e+00> : vector<8x10xf32>
    %6 = tpu.matmul %3, %4, %cst {dimension_numbers = #tpu.dot_dimension_numbers<[1], [0], [0], [1], [0, 0, 1, 1], [], []>} : vector<8x32xf32>, vector<32x10xf32>, vector<8x10xf32> -> vector<8x10xf32>
    %7 = arith.addf %5, %6 : vector<8x10xf32>
    %c0_6 = arith.constant 0 : index
    %c0_7 = arith.constant 0 : index
    %8 = vector.load %arg6[%c0_6, %c0_7] : memref<8x10xf32, #tpu.memory_space<vmem>>, vector<8x10xf32>
    tpu.vector_store %arg6[%c0_6, %c0_7], %7 {strides = array<i32>} : memref<8x10xf32, #tpu.memory_space<vmem>>, vector<8x10xf32>,
    %c0_i32_8 = arith.constant 0 : i32
    %9 = arith.cmpi eq, %arg1, %c0_i32_8 : i32
    %10 = arith.extui %9 : i1 to i32
    %c0_i32_9 = arith.constant 0 : i32
    %11 = arith.cmpi ne, %10, %c0_i32_9 : i32
    scf.if %11 {
      %c0_10 = arith.constant 0 : index
      %c0_11 = arith.constant 0 : index
      %12 = vector.load %arg6[%c0_10, %c0_11] : memref<8x10xf32, #tpu.memory_space<vmem>>, vector<8x10xf32>
      %c0_12 = arith.constant 0 : index
      %c0_13 = arith.constant 0 : index
      %13 = vector.load %arg4[%c0_12, %c0_13] : memref<1x10xf32, #tpu.memory_space<vmem>>, vector<1x10xf32>
      %14 = vector.broadcast %13 : vector<1x10xf32> to vector<8x10xf32>
      %15 = arith.addf %12, %14 : vector<8x10xf32>
      %c0_14 = arith.constant 0 : index
      %c0_15 = arith.constant 0 : index
      %16 = vector.load %arg5[%c0_14, %c0_15] : memref<8x10xf32, #tpu.memory_space<vmem>>, vector<8x10xf32>
      tpu.vector_store %arg5[%c0_14, %c0_15], %15 {strides = array<i32>} : memref<8x10xf32, #tpu.memory_space<vmem>>, vector<8x10xf32>,
    } else {
    }
    return
  }
  func.func @transform_0(%arg0: i32, %arg1: i32) -> (i32, i32) {
    %c0_i32 = arith.constant 0 : i32
    return %arg0, %arg1 : i32, i32
  }
  func.func @transform_1(%arg0: i32, %arg1: i32) -> (i32, i32) {
    %c0_i32 = arith.constant 0 : i32
    %c0_i32_0 = arith.constant 0 : i32
    return %arg1, %c0_i32 : i32, i32
  }
  func.func @transform_2(%arg0: i32, %arg1: i32) -> (i32, i32) {
    %c0_i32 = arith.constant 0 : i32
    %c0_i32_0 = arith.constant 0 : i32
    %c0_i32_1 = arith.constant 0 : i32
    return %c0_i32, %c0_i32_0 : i32, i32
  }
  func.func @transform_3(%arg0: i32, %arg1: i32) -> (i32, i32) {
    %c0_i32 = arith.constant 0 : i32
    %c0_i32_0 = arith.constant 0 : i32
    return %arg0, %c0_i32 : i32, i32
  }
}

</mosaic_0001>

<llo_original>
// kernel: tpu_custom_call.1
$region0: #{tpu_custom_call.1}
  #allocation0 [shape = 'u32[]', space=smem, size = 0x4, offset = 0x4, fixed_abs, tag = 'smem constant byte address 0x4 - core index']
  #allocation1 [shape = 'u32[144,128]{1,0:T(1,128)}', space=vmem, size = 0x12000, scoped, tag = 'internal scratch']
  #allocation2 [shape = 'f32[8,10]{1,0:T(8,128)}', space=vmem, size = 0x1000, scoped, tag = 'scratch operand']
  %s0 = inlined_call_operand.vmem [shape: f32[2,32], index: 0, kind: input, shape index: {}]
  %s1 = inlined_call_operand.vmem [shape: f32[32,10], index: 1, kind: input, shape index: {}]
  %s2 = inlined_call_operand.vmem [shape: f32[1,10], index: 2, kind: input, shape index: {}]
  %s3 = inlined_call_operand.hbm [shape: f32[2,10], index: 3, kind: output, shape index: {}]
  %s4 = sld [smem:[#allocation0]]
  $region30: #{tpu_custom_call.1} parent=0
    _
  %s6 = ssub.s32 1, %s4
  %s7 = scalar_select 0, %s6, %s4
  $region1: #{tpu_custom_call.1} parent=0
    #allocation3 [shape = 'u8[4096]{0}', space=vmem, size = 0x1000, scoped, tag = 'output window, operand 0, single buffered']
    #allocation4 [shape = 's32[1]{0}', space=sflag, size = 0x4, scoped, tag = 'scoped memory for tpu_custom_call.1']
    %8 = vsyncpa [#allocation4], 0
    // Predicated region
    $region2: #{tpu_custom_call.1} parent=1 // pred_check
      _
    $region3: #{tpu_custom_call.1} parent=1 // pred_check_branch
      %10 = sbr.rel (0) target = $region5
    $region4: #{tpu_custom_call.1} parent=1 // pred_region
      _
    $region5: #{tpu_custom_call.1} parent=1 // pred_fallthru
      _
    // Predicated region
    $region6: #{tpu_custom_call.1} parent=1 // pred_check
      _
    $region7: #{tpu_custom_call.1} parent=1 // pred_check_branch
      %12 = sbr.rel (0) target = $region9
    $region8: #{tpu_custom_call.1} parent=1 // pred_region
      _
    $region9: #{tpu_custom_call.1} parent=1 // pred_fallthru
      _
    // Predicated region
    $region10: #{tpu_custom_call.1} parent=1 // pred_check
      _
    $region11: #{tpu_custom_call.1} parent=1 // pred_check_branch
      %14 = sbr.rel (0) target = $region13
    $region12: #{tpu_custom_call.1} parent=1 // pred_region
      _
    $region13: #{tpu_custom_call.1} parent=1 // pred_fallthru
      _
    %p15 = scmp.eq.s32.totalorder 0, 0
    // Predicated region
    $region14: #{tpu_custom_call.1} parent=1 // pred_check
      %p16 = pneg %p15
    $region15: #{tpu_custom_call.1} parent=1 // pred_check_branch
      %18 = sbr.rel (%p16) target = $region17
    $region16: #{tpu_custom_call.1} parent=1 // pred_region
      %vm19 = vcmask 80896
      %20 = vst.msk [vmem:[#allocation2] sm:$0xff] %vm19, 0.0
    $region17: #{tpu_custom_call.1} parent=1 // pred_fallthru
      _
    %v21 = vld [vmem:[%s0] sm:$0xff]
    %v22 = vld [vmem:[%s1] sm:$0xff]
    %v23 = vld [vmem:[%s1 + $0x8] sm:$0xff]
    %v24 = vld [vmem:[%s1 + $0x10] sm:$0xff]
    %v25 = vld [vmem:[%s1 + $0x18] sm:$0xff]
    %v26 = vld [vmem:[#allocation2] sm:$0xff]
    %vm27 = vcmask 261120
    %v29 = vsel %vm27, %v21, 0
    %31 = vmatprep.subr.mxu0 0.0
    %32 = vmatpush1.msra.mxu0 %v22
    %33 = vmatprep.subr.mxu0 0.0
    %34 = vmatpush1.msra.mxu0 %v23
    %35 = vmatprep.subr.mxu0 0.0
    %36 = vmatpush1.msra.mxu0 %v24
    %37 = vmatprep.subr.mxu0 0.0
    %38 = vmatpush1.msra.mxu0 %v25
    %39 = vmatprep.subr.mxu0 0.0
    %40 = vmatpush1.msra.mxu0 0.0
    %41 = vmatprep.subr.mxu0 0.0
    %42 = vmatpush1.msra.mxu0 0.0
    %43 = vmatprep.subr.mxu0 0.0
    %44 = vmatpush1.msra.mxu0 0.0
    %45 = vmatprep.subr.mxu0 0.0
    %46 = vmatpush1.msra.mxu0 0.0
    %47 = vmatprep.subr.mxu0 0.0
    %48 = vmatpush1.msra.mxu0 0.0
    %49 = vmatprep.subr.mxu0 0.0
    %50 = vmatpush1.msra.mxu0 0.0
    %51 = vmatprep.subr.mxu0 0.0
    %52 = vmatpush1.msra.mxu0 0.0
    %53 = vmatprep.subr.mxu0 0.0
    %54 = vmatpush1.msra.mxu0 0.0
    %55 = vmatprep.subr.mxu0 0.0
    %56 = vmatpush1.msra.mxu0 0.0
    %57 = vmatprep.subr.mxu0 0.0
    %58 = vmatpush1.msra.mxu0 0.0
    %59 = vmatprep.subr.mxu0 0.0
    %60 = vmatpush1.msra.mxu0 0.0
    %61 = vmatprep.subr.mxu0 0.0
    %62 = vmatpush1.msra.mxu0 0.0
    %63 = vmatprep.subr.mxu0 0.0
    %64 = vmatpush1.msra.mxu0 0.0
    %65 = vmatprep.subr.mxu0 0.0
    %66 = vmatpush1.msra.mxu0 0.0
    %67 = vmatprep.subr.mxu0 0.0
    %68 = vmatpush1.msra.mxu0 0.0
    %69 = vmatprep.subr.mxu0 0.0
    %70 = vmatpush1.msra.mxu0 0.0
    %71 = vmatprep.subr.mxu0 0.0
    %72 = vmatpush1.msra.mxu0 0.0
    %73 = vmatprep.subr.mxu0 0.0
    %74 = vmatpush1.msra.mxu0 0.0
    %75 = vmatprep.subr.mxu0 0.0
    %76 = vmatpush1.msra.mxu0 0.0
    %77 = vmatprep.subr.mxu0 0.0
    %78 = vmatpush1.msra.mxu0 0.0
    %79 = vmatprep.subr.mxu0 0.0
    %80 = vmatpush1.msra.mxu0 0.0
    %81 = vmatprep.subr.mxu0 0.0
    %82 = vmatpush1.msra.mxu0 0.0
    %83 = vmatprep.subr.mxu0 0.0
    %84 = vmatpush1.msra.mxu0 0.0
    %85 = vmatprep.subr.mxu0 0.0
    %86 = vmatpush1.msra.mxu0 0.0
    %87 = vmatprep.subr.mxu0 0.0
    %88 = vmatpush1.msra.mxu0 0.0
    %89 = vmatprep.subr.mxu0 0.0
    %90 = vmatpush1.msra.mxu0 0.0
    %91 = vmatprep.subr.mxu0 0.0
    %92 = vmatpush1.msra.mxu0 0.0
    %93 = vmatprep.subr.mxu0 0.0
    %94 = vmatpush1.msra.mxu0 0.0
    %95 = vmatprep.mubr.f32.mxu0 0.0
    %96 = vmatmul.mubr.f32.gmra.mrb[0].mxu0 %v29
    %v97 = vpop.f32.mrb[0].mxu0
    %v98 = vadd.f32 0.0, %v97
    %v99 = vpop.f32.mrb[0].mxu0
    %100 = vdwg.mxu0
    %v101 = vadd.f32 %v26, %v98
    %vm102 = vcmask 80896
    %103 = vst.msk [vmem:[#allocation2] sm:$0xff] %vm102, %v101
    // Predicated region
    $region18: #{tpu_custom_call.1} parent=1 // pred_check
      %p104 = pneg %p15
    $region19: #{tpu_custom_call.1} parent=1 // pred_check_branch
      %106 = sbr.rel (%p104) target = $region21
    $region20: #{tpu_custom_call.1} parent=1 // pred_region
      %v107 = vld [vmem:[#allocation2] sm:$0xff]
      %v108 = vld [vmem:[%s2] sm:$0x1]
      %v110 = vlaneseq
      %v111 = vshrl.u32 %v110, 7
      %v112 = vsub.s32 0, %v111
      %v113 = vrot.slane %v108, %v112
      %v115 = vadd.f32 %v107, %v113
      %116 = vst.msk [vmem:[#allocation3] sm:$0xff] %vm102, %v115
    $region21: #{tpu_custom_call.1} parent=1 // pred_fallthru
      _
    // Predicated region
    $region22: #{tpu_custom_call.1} parent=1 // pred_check
      _
    $region23: #{tpu_custom_call.1} parent=1 // pred_check_branch
      %118 = sbr.rel (0) target = $region25
    $region24: #{tpu_custom_call.1} parent=1 // pred_region
      %s120 = ssub.s32 128, 32
      %121 = vsyncadd [#allocation4], %s120
      %s122 = sshll.u32 [#allocation3], 4
      %s123 = int_to_ptr.vmem [resolvable:$true] %s122
      %128 = dma.vmem_to_hbm [thread:$0]  %s123, 32, %s3, [#allocation4], 32, 32, 2
    $region25: #{tpu_custom_call.1} parent=1 // pred_fallthru
      _
    // Predicated region
    $region26: #{tpu_custom_call.1} parent=1 // pred_check
      _
    $region27: #{tpu_custom_call.1} parent=1 // pred_check_branch
      %130 = sbr.rel (0) target = $region29
    $region28: #{tpu_custom_call.1} parent=1 // pred_region
      %131 = dma.done [#allocation4], 128
    $region29: #{tpu_custom_call.1} parent=1 // pred_fallthru
      _
    %132 = vsyncpa [#allocation4], 1

</llo_original>
